<compile_context>
chip_gen: v6e
topology: v6e:2x2x1
jax: 0.10.0
libtpu: 0.0.40
codegen_flags: <defaults>
</compile_context>

<pallas_src>
import jax
import jax.numpy as jnp
from jax.experimental import pallas as pl
from jax.experimental.pallas import tpu as pltpu


def _policy_kernel(p_ref, probs_ref, logits_ref):
    x = p_ref[...]                                    # (1, actions), f32
    total = jnp.sum(x, axis=-1, keepdims=True)        # (1, 1); single-row lane reduce
    inv_total = pl.reciprocal(total, approx=False)    # exact; off the VALU slot
    probs_ref[...] = x * inv_total                    # normalized probabilities
    # log(x) runs on the EUP concurrently with the reduce; subtract log(total)
    # afterwards instead of waiting on the division result.
    logits_ref[...] = jnp.log(x) - jnp.log(total)
    # TODO(synk): torch's Categorical applies clamp_probs (eps-clamp) before
    # log, so exactly-zero probabilities get log(eps) there but -inf here.


def random_discrete_policy(observation, probs_param):
    """Pallas forward of RandomDiscretePolicy.

    Returns (probs, logits) of the Categorical distribution.  `observation`
    is accepted only to mirror the PyTorch signature and is ignored, exactly
    like the reference module's forward().
    """
    del observation  # forward() ignores its input, so we never DMA it.
    actions = probs_param.shape[-1]

    p_in = probs_param.astype(jnp.float32).reshape(1, actions)

    cost = pl.CostEstimate(
        flops=4 * actions,                 # reduce + reciprocal + mul + sub
        transcendentals=actions + 1,       # log(x) per action + log(total)
        bytes_accessed=4 * 3 * actions,    # (1,A) in + two (1,A) out
    )

    vmem = pl.BlockSpec(memory_space=pltpu.MemorySpace.VMEM)
    probs, logits = pl.pallas_call(
        _policy_kernel,
        out_shape=(
            jax.ShapeDtypeStruct((1, actions), jnp.float32),
            jax.ShapeDtypeStruct((1, actions), jnp.float32),
        ),
        in_specs=[vmem],
        out_specs=(vmem, vmem),
        cost_estimate=cost,
    )(p_in)

    # NOTE(v7x): if this is ever batched over multiple policy heads, add a
    # leading grid axis with dimension_semantics=("parallel",) so both
    # TensorCores get work; a single head does not warrant a grid.
    return probs.reshape(actions), logits.reshape(actions)


if __name__ == "__main__":
    key = jax.random.PRNGKey(0)
    k_probs, k_obs = jax.random.split(key)

    actions = 8
    batch, features = 4, 16

    # The module initializes probs = ones(actions)/actions; use a deterministic
    # positive perturbation so the in-kernel normalization is actually exercised.
    probs_param = jax.random.uniform(k_probs, (actions,), jnp.float32,
                                     minval=0.1, maxval=1.0)
    observation = jax.random.normal(k_obs, (batch, features), jnp.float32)

    probs, logits = random_discrete_policy(observation, probs_param)
    jax.block_until_ready((probs, logits))

    # Reference: what torch.distributions.Categorical(probs=...) stores.
    ref_p = probs_param / jnp.sum(probs_param)
    ref_logits = jnp.log(ref_p)

    assert probs.shape == (actions,) and logits.shape == (actions,)
    assert jnp.allclose(probs, ref_p, atol=1e-6, rtol=1e-5)
    assert jnp.allclose(logits, ref_logits, atol=1e-6, rtol=1e-5)
    assert jnp.allclose(jnp.sum(probs), 1.0, atol=1e-6)

    # Also check the module's default init (uniform categorical).
    uni_probs, uni_logits = random_discrete_policy(
        observation, jnp.ones((actions,), jnp.float32) / actions)
    jax.block_until_ready((uni_probs, uni_logits))
    assert jnp.allclose(uni_probs, jnp.full((actions,), 1.0 / actions), atol=1e-6)
    assert jnp.allclose(uni_logits, jnp.log(uni_probs), atol=1e-6, rtol=1e-5)

    # TODO(synk): Categorical sampling / log_prob evaluation is not part of the
    # module's forward pass and is left to the caller (e.g. jax.random.categorical
    # on the returned logits).
    print("KERNEL_OK")
</pallas_src>

<mosaic_0001>
module attributes {stable_mosaic.version = 11 : i64} {
  func.func @_policy_kernel(%arg0: memref<1x8xf32, #tpu.memory_space<vmem>>, %arg1: memref<1x8xf32, #tpu.memory_space<vmem>>, %arg2: memref<1x8xf32, #tpu.memory_space<vmem>>) attributes {dimension_semantics = [], scalar_prefetch = 0 : i64, scratch_operands = 0 : i64, tpu.core_type = #tpu.core_type<tc>} {
    %c0 = arith.constant 0 : index
    %c0_0 = arith.constant 0 : index
    %0 = vector.load %arg0[%c0, %c0_0] : memref<1x8xf32, #tpu.memory_space<vmem>>, vector<1x8xf32>
    %cst = arith.constant dense<0.000000e+00> : vector<1xf32>
    %1 = vector.multi_reduction <add>, %0, %cst [1] : vector<1x8xf32> to vector<1xf32>
    %2 = vector.shape_cast %1 : vector<1xf32> to vector<1x1xf32>
    %3 = tpu.reciprocal %2 : vector<1x1xf32> -> vector<1x1xf32>
    %4 = vector.broadcast %3 : vector<1x1xf32> to vector<1x8xf32>
    %5 = arith.mulf %0, %4 : vector<1x8xf32>
    %c0_1 = arith.constant 0 : index
    %c0_2 = arith.constant 0 : index
    %6 = vector.load %arg1[%c0_1, %c0_2] : memref<1x8xf32, #tpu.memory_space<vmem>>, vector<1x8xf32>
    tpu.vector_store %arg1[%c0_1, %c0_2], %5 {strides = array<i32>} : memref<1x8xf32, #tpu.memory_space<vmem>>, vector<1x8xf32>,
    %7 = math.log %0 : vector<1x8xf32>
    %8 = math.log %2 : vector<1x1xf32>
    %9 = vector.broadcast %8 : vector<1x1xf32> to vector<1x8xf32>
    %10 = arith.subf %7, %9 : vector<1x8xf32>
    %c0_3 = arith.constant 0 : index
    %c0_4 = arith.constant 0 : index
    %11 = vector.load %arg2[%c0_3, %c0_4] : memref<1x8xf32, #tpu.memory_space<vmem>>, vector<1x8xf32>
    tpu.vector_store %arg2[%c0_3, %c0_4], %10 {strides = array<i32>} : memref<1x8xf32, #tpu.memory_space<vmem>>, vector<1x8xf32>,
    return
  }
}

</mosaic_0001>

<llo_original>
// kernel: tpu_custom_call.1
$region0: #{tpu_custom_call.1}
  #allocation0 [shape = 'u32[]', space=smem, size = 0x4, offset = 0x4, fixed_abs, tag = 'smem constant byte address 0x4 - core index']
  #allocation1 [shape = 'u32[144,128]{1,0:T(1,128)}', space=vmem, size = 0x12000, scoped, tag = 'internal scratch']
  %s0 = inlined_call_operand.hbm [shape: f32[1,8], index: 0, kind: input, shape index: {}]
  %s1 = inlined_call_operand.hbm [shape: f32[1,8], index: 1, kind: output, shape index: {0}]
  %s2 = inlined_call_operand.hbm [shape: f32[1,8], index: 2, kind: output, shape index: {1}]
  %3 = xla_tuple %s1, %s2
  %s4 = sld [smem:[#allocation0]]
  $region26: #{tpu_custom_call.1} parent=0
    _
  %s6 = ssub.s32 1, %s4
  %s7 = scalar_select 0, %s6, %s4
  $region1: #{tpu_custom_call.1} parent=0
    #allocation2 [shape = 'u8[512]{0}', space=vmem, size = 0x400, scoped, tag = 'input window, operand 0, single buffered']
    #allocation3 [shape = 's32[1]{0}', space=sflag, size = 0x4, scoped, tag = 'scoped memory for tpu_custom_call.1']
    #allocation4 [shape = 's32[1]{0}', space=sflag, size = 0x4, scoped, tag = 'scoped memory for tpu_custom_call.1']
    #allocation5 [shape = 'u8[512]{0}', space=vmem, size = 0x400, scoped, tag = 'output window, operand 0, single buffered']
    #allocation6 [shape = 'u8[512]{0}', space=vmem, size = 0x400, scoped, tag = 'output window, operand 1, single buffered']
    #allocation7 [shape = 's32[1]{0}', space=sflag, size = 0x4, scoped, tag = 'scoped memory for tpu_custom_call.1']
    %8 = vsyncpa [#allocation3], 0
    %9 = vsyncpa [#allocation4], 0
    %10 = vsyncpa [#allocation7], 0
    // Predicated region
    $region2: #{tpu_custom_call.1} parent=1 // pred_check
      _
    $region3: #{tpu_custom_call.1} parent=1 // pred_check_branch
      %12 = sbr.rel (0) target = $region5
    $region4: #{tpu_custom_call.1} parent=1 // pred_region
      %s14 = ssub.s32 16, 16
      %15 = vsyncadd [#allocation3], %s14
      %s17 = sshll.u32 [#allocation2], 4
      %s18 = int_to_ptr.vmem [resolvable:$true] %s17
      %20 = dma.hbm_to_vmem [thread:$0]  %s0, 16, %s18, [#allocation3]
    $region5: #{tpu_custom_call.1} parent=1 // pred_fallthru
      _
    // Predicated region
    $region6: #{tpu_custom_call.1} parent=1 // pred_check
      _
    $region7: #{tpu_custom_call.1} parent=1 // pred_check_branch
      %22 = sbr.rel (0) target = $region9
    $region8: #{tpu_custom_call.1} parent=1 // pred_region
      %23 = dma.done [#allocation3], 16
    $region9: #{tpu_custom_call.1} parent=1 // pred_fallthru
      _
    %v24 = vld [vmem:[#allocation2] sm:$0x1]
    %vm25 = vcmask 57344
    %v26 = vsel %vm25, %v24, 0.0
    %27 = vadd.xlane.f32.xlu0 %v26
    %v28 = vpop.xlane.xlu0 %27
    %v29 = vrcp.pop %v28
    %v30 = vmul.f32 %v24, %v29
    %31 = vst.msk [vmem:[#allocation5] sm:$0x1] %vm25, %v30
    %v32 = vlog2.pop %v24
    %v33 = vmul.f32 %v32, 0.6931472
    %v34 = vlog2.pop %v28
    %v35 = vmul.f32 %v34, 0.6931472
    %v36 = vsub.f32 %v33, %v35
    %37 = vst.msk [vmem:[#allocation6] sm:$0x1] %vm25, %v36
    // Predicated region
    $region10: #{tpu_custom_call.1} parent=1 // pred_check
      _
    $region11: #{tpu_custom_call.1} parent=1 // pred_check_branch
      %39 = sbr.rel (0) target = $region13
    $region12: #{tpu_custom_call.1} parent=1 // pred_region
      %s41 = ssub.s32 16, 16
      %42 = vsyncadd [#allocation4], %s41
      %s44 = sshll.u32 [#allocation5], 4
      %s45 = int_to_ptr.vmem [resolvable:$true] %s44
      %47 = dma.vmem_to_hbm [thread:$0]  %s45, 16, %s1, [#allocation4]
    $region13: #{tpu_custom_call.1} parent=1 // pred_fallthru
      _
    // Predicated region
    $region14: #{tpu_custom_call.1} parent=1 // pred_check
      _
    $region15: #{tpu_custom_call.1} parent=1 // pred_check_branch
      %49 = sbr.rel (0) target = $region17
    $region16: #{tpu_custom_call.1} parent=1 // pred_region
      %s51 = ssub.s32 16, 16
      %52 = vsyncadd [#allocation7], %s51
      %s54 = sshll.u32 [#allocation6], 4
      %s55 = int_to_ptr.vmem [resolvable:$true] %s54
      %57 = dma.vmem_to_hbm [thread:$0]  %s55, 16, %s2, [#allocation7]
    $region17: #{tpu_custom_call.1} parent=1 // pred_fallthru
      _
    // Predicated region
    $region18: #{tpu_custom_call.1} parent=1 // pred_check
      _
    $region19: #{tpu_custom_call.1} parent=1 // pred_check_branch
      %59 = sbr.rel (0) target = $region21
    $region20: #{tpu_custom_call.1} parent=1 // pred_region
      %60 = dma.done [#allocation4], 16
    $region21: #{tpu_custom_call.1} parent=1 // pred_fallthru
      _
    // Predicated region
    $region22: #{tpu_custom_call.1} parent=1 // pred_check
      _
    $region23: #{tpu_custom_call.1} parent=1 // pred_check_branch
      %62 = sbr.rel (0) target = $region25
    $region24: #{tpu_custom_call.1} parent=1 // pred_region
      %63 = dma.done [#allocation7], 16
    $region25: #{tpu_custom_call.1} parent=1 // pred_fallthru
      _
    %64 = vsyncpa [#allocation3], 1
    %65 = vsyncpa [#allocation4], 1
    %66 = vsyncpa [#allocation7], 1

</llo_original>
